<compile_context>
chip_gen: v5e
topology: v5e:2x2
jax: 0.10.0
libtpu: 0.0.40
codegen_flags: <defaults>
</compile_context>

<pallas_src>
import functools

import jax
import jax.numpy as jnp
from jax.experimental import pallas as pl
from jax.experimental.pallas import tpu as pltpu


# ------------------------------ helpers -------------------------------------

def _round_up(x, m):
    return (x + m - 1) // m * m


def _pick_tile(n, pref, mult, min_tiles=1):
    """Tile size (multiple of `mult`, <= pref) and padded extent (multiple of tile)."""
    n_r = _round_up(max(n, 1), mult)
    t = min(pref, n_r)
    if min_tiles > 1:  # keep >= min_tiles tiles (v7x: shard dst axis over 2 TCs)
        t = min(t, max(mult, _round_up(-(-n_r // min_tiles), mult)))
    n_p = _round_up(n_r, t)
    return t, n_p


def _pad2(x, rows, cols):
    return jnp.pad(x, ((0, rows - x.shape[0]), (0, cols - x.shape[1])))


def _tpu_config():
    """Per-generation knobs: adjacency dtype, VMEM limit, dst-tile count target."""
    try:
        kind = jax.devices()[0].device_kind.lower()
    except Exception:
        kind = ""
    is_v7 = "v7" in kind
    int8_mxu = any(t in kind for t in ("v4", "v5", "v6"))  # v7x MXU has no int path
    if is_v7:
        vmem_limit = 48 * 1024 * 1024      # 64 MiB physical per TC on v7x
    elif int8_mxu:
        vmem_limit = 96 * 1024 * 1024      # 128 MiB physical on v4/v5e/v6e
    else:
        vmem_limit = 32 * 1024 * 1024      # conservative default
    return {"int8_adj": int8_mxu,
            "vmem_limit": vmem_limit,
            "min_dst_tiles": 2 if is_v7 else 1}


# -------------------- Pallas kernel 1: per-relation Linear -------------------

def _linear_kernel(x_ref, w_ref, o_ref):
    o_ref[...] = jnp.dot(x_ref[...], w_ref[...],
                         preferred_element_type=jnp.float32).astype(o_ref.dtype)


@functools.partial(jax.jit, static_argnames=("ts", "vmem_limit"))
def linear_bf16(x, w, *, ts, vmem_limit):
    """Wh = x @ w (bf16 in / bf16 out, f32 MXU accumulation), tiled over rows."""
    n_p, in_p = x.shape
    out_p = w.shape[1]
    return pl.pallas_call(
        _linear_kernel,
        out_shape=jax.ShapeDtypeStruct((n_p, out_p), jnp.bfloat16),
        grid_spec=pltpu.PrefetchScalarGridSpec(
            num_scalar_prefetch=0,
            grid=(n_p // ts,),
            in_specs=[pl.BlockSpec((ts, in_p), lambda i: (i, 0)),
                      pl.BlockSpec((in_p, out_p), lambda i: (0, 0))],
            out_specs=pl.BlockSpec((ts, out_p), lambda i: (i, 0)),
        ),
        compiler_params=pltpu.CompilerParams(
            dimension_semantics=("parallel",),
            vmem_limit_bytes=vmem_limit),
    )(x, w)


# ------------- Pallas kernel 2: mean-aggregate + cross-etype sum -------------

def _agg_kernel(a_ref, wh_ref, b_ref, dinv_ref, accin_ref, o_ref,
                *, tk, wh_resident):
    """out = acc_in + (sum_k A[i,k] @ Wh[k]) * deg_inv[i] + (deg>0) * b.

    a_ref     : [TM, TK]        int8 / bf16 / f32 raw edge-count adjacency tile
    wh_ref    : [N_SRC_P,OUT_P] (resident) or [TK, OUT_P] (streamed) bf16 Wh
    b_ref     : [1, OUT_P]      f32 relation bias
    dinv_ref  : [TM, 1]         f32 1/in-degree (0 where deg == 0)
    accin_ref : [TM, OUT_P]     f32 running cross-etype sum (aliased with o_ref)
    o_ref     : [TM, OUT_P]     f32 output block, resident over k (accumulator)
    """
    k = pl.program_id(1)

    @pl.when(k == 0)
    def _():
        o_ref[...] = jnp.zeros_like(o_ref)

    a = a_ref[...]
    if a.dtype == jnp.int8:                    # dequant int8 HBM stream for the MXU
        a = a.astype(jnp.float32).astype(jnp.bfloat16)
    if wh_resident:                            # slice the VMEM-resident Wh slab
        start = pl.multiple_of(k * tk, 128)
        wh = wh_ref[pl.ds(start, tk), :]
    else:
        wh = wh_ref[...]
    o_ref[...] += jnp.dot(a, wh, preferred_element_type=jnp.float32)

    @pl.when(k == pl.num_programs(1) - 1)
    def _():
        dinv = dinv_ref[...]                          # [TM, 1]
        gate = (dinv > 0.0).astype(jnp.float32)       # bias only where deg > 0
        o_ref[...] = accin_ref[...] + o_ref[...] * dinv + gate * b_ref[...]


@functools.partial(jax.jit,
                   static_argnames=("tm", "tk", "wh_resident", "vmem_limit"),
                   donate_argnums=(4,))
def rel_aggregate(a, wh, b, deg_inv, acc_in, *, tm, tk, wh_resident, vmem_limit):
    """out = acc_in + mean_{edges s->d}(Wh[s]) + (deg>0)*b   (padded shapes)."""
    n_dst_p, n_src_p = a.shape
    out_p = wh.shape[1]
    grid = (n_dst_p // tm, n_src_p // tk)

    if wh_resident:
        wh_spec = pl.BlockSpec((n_src_p, out_p), lambda i, k: (0, 0))   # fetched once
    else:
        wh_spec = pl.BlockSpec((tk, out_p), lambda i, k: (k, 0))        # streamed

    kernel = functools.partial(_agg_kernel, tk=tk, wh_resident=wh_resident)
    return pl.pallas_call(
        kernel,
        out_shape=jax.ShapeDtypeStruct((n_dst_p, out_p), jnp.float32),
        grid_spec=pltpu.PrefetchScalarGridSpec(
            num_scalar_prefetch=0,
            grid=grid,
            in_specs=[
                pl.BlockSpec((tm, tk), lambda i, k: (i, k)),        # A tile
                wh_spec,                                            # Wh
                pl.BlockSpec((1, out_p), lambda i, k: (0, 0)),      # bias
                pl.BlockSpec((tm, 1), lambda i, k: (i, 0)),         # 1/deg
                pl.BlockSpec((tm, out_p), lambda i, k: (i, 0)),     # acc_in (aliased)
            ],
            out_specs=pl.BlockSpec((tm, out_p), lambda i, k: (i, 0)),
        ),
        input_output_aliases={4: 0},   # cross-etype sum accumulates in place
        compiler_params=pltpu.CompilerParams(
            dimension_semantics=("parallel", "arbitrary"),
            vmem_limit_bytes=vmem_limit),
    )(a, wh, b, deg_inv, acc_in)


# --------------------------- Hetero layer (glue) ----------------------------

def build_rel_adj(src_idx, dst_idx, n_src, n_dst):
    """Raw edge-count adjacency (f32) and 1/in-degree vector (0 where deg==0)."""
    counts = jnp.zeros((n_dst, n_src), jnp.float32).at[dst_idx, src_idx].add(1.0)
    deg = counts.sum(axis=1, keepdims=True)
    deg_inv = jnp.where(deg > 0.0, 1.0 / deg, 0.0)
    return counts, deg_inv


def hetero_rgcn_layer(canonical_etypes, graph_edges, num_nodes, feat_dict, params,
                      *, tm_pref=1024, tk_pref=2048):
    """Mirror of HeteroRGCNLayer.forward.

    canonical_etypes: list of (srctype, etype, dsttype)
    graph_edges:      dict etype -> (src_idx, dst_idx) int arrays
    num_nodes:        dict ntype -> int
    feat_dict:        dict ntype -> [num_nodes, in_size] f32
    params:           dict etype -> (W [in, out], b [1, out])
    """
    cfg = _tpu_config()
    out_padded = {}
    out_size = None
    for srctype, etype, dsttype in canonical_etypes:
        if srctype not in feat_dict:
            continue
        w, b = params[etype]
        in_size, out_size = w.shape
        n_src = num_nodes[srctype]
        n_dst = num_nodes[dsttype]

        tk, n_src_p = _pick_tile(n_src, tk_pref, 128)                       # A lanes
        tm, n_dst_p = _pick_tile(n_dst, tm_pref, 256, cfg["min_dst_tiles"])  # A sublanes
        in_p = _round_up(in_size, 128)
        out_p = _round_up(out_size, 128)           # lane-dense output slab
        # TODO(synk): add an output-feature grid axis if tm*out_p*f32 outgrows VMEM.

        src_idx, dst_idx = graph_edges[etype]
        counts, deg_inv = build_rel_adj(src_idx, dst_idx, n_src, n_dst)

        # Adjacency dtype: int8 on int8-MXU chips (exact for counts <= 127),
        # else bf16 (exact for counts <= 256), else f32 for heavy multi-edges.
        cmax = int(jnp.max(counts)) if counts.size else 0
        if cfg["int8_adj"] and cmax <= 127:
            a_dtype = jnp.int8
        elif cmax <= 256:
            a_dtype = jnp.bfloat16
        else:
            a_dtype = jnp.float32
        a_pad = _pad2(counts, n_dst_p, n_src_p).astype(a_dtype)

        # Wh = X @ W computed once per relation (hoisted out of the dst-tile loop).
        x_pad = _pad2(feat_dict[srctype], n_src_p, in_p).astype(jnp.bfloat16)
        w_pad = _pad2(w, in_p, out_p).astype(jnp.bfloat16)
        ts = tk if tk <= 1024 else tk // 2
        wh = linear_bf16(x_pad, w_pad, ts=ts, vmem_limit=cfg["vmem_limit"])

        b_pad = _pad2(b, 1, out_p).astype(jnp.float32)
        dinv_pad = _pad2(deg_inv, n_dst_p, 1).astype(jnp.float32)

        # Keep Wh fully VMEM-resident when it fits the per-generation budget.
        a_bytes = jnp.dtype(a_dtype).itemsize
        per_step = (2 * tm * tk * a_bytes          # A tile (double-buffered)
                    + 4 * tm * out_p * 4           # acc_in + out (double-buffered)
                    + 2 * (tm + out_p) * 4)        # deg_inv + bias
        wh_bytes = n_src_p * out_p * 2
        wh_resident = wh_bytes + per_step <= int(0.55 * cfg["vmem_limit"])

        acc = out_padded.get(dsttype)
        if acc is None:
            acc = jnp.zeros((n_dst_p, out_p), jnp.float32)
        out_padded[dsttype] = rel_aggregate(
            a_pad, wh, b_pad, dinv_pad, acc,
            tm=tm, tk=tk, wh_resident=wh_resident, vmem_limit=cfg["vmem_limit"])

    return {nt: v[:num_nodes[nt], :out_size] for nt, v in out_padded.items()}


# Pure-JAX f32 reference for correctness checking.
def hetero_rgcn_layer_ref(canonical_etypes, graph_edges, num_nodes, feat_dict, params):
    out = {}
    for srctype, etype, dsttype in canonical_etypes:
        if srctype not in feat_dict:
            continue
        src_idx, dst_idx = graph_edges[etype]
        counts, deg_inv = build_rel_adj(src_idx, dst_idx,
                                        num_nodes[srctype], num_nodes[dsttype])
        w, b = params[etype]
        wh = feat_dict[srctype] @ w + b
        a_norm = counts * deg_inv
        out[dsttype] = out.get(dsttype, 0.0) + a_norm @ wh
    return out


# --------------------------------- Main -------------------------------------

if __name__ == "__main__":
    in_size, out_size = 32, 64

    # Small synthetic heterograph: two node types, three relations.
    num_nodes = {"user": 12, "item": 16}
    canonical_etypes = [
        ("user", "follows", "user"),
        ("user", "buys", "item"),
        ("item", "bought_by", "user"),
    ]

    key = jax.random.PRNGKey(0)
    keys = jax.random.split(key, 16)

    # Deterministic random edge lists per relation.
    graph_edges = {
        "follows": (
            jax.random.randint(keys[0], (20,), 0, num_nodes["user"]),
            jax.random.randint(keys[1], (20,), 0, num_nodes["user"]),
        ),
        "buys": (
            jax.random.randint(keys[2], (24,), 0, num_nodes["user"]),
            jax.random.randint(keys[3], (24,), 0, num_nodes["item"]),
        ),
        "bought_by": (
            jax.random.randint(keys[4], (24,), 0, num_nodes["item"]),
            jax.random.randint(keys[5], (24,), 0, num_nodes["user"]),
        ),
    }

    # Node features.
    feat_dict = {
        "user": jax.random.normal(keys[6], (num_nodes["user"], in_size), jnp.float32),
        "item": jax.random.normal(keys[7], (num_nodes["item"], in_size), jnp.float32),
    }

    # Per-relation Linear params (deterministic, nn.Linear-style uniform init).
    bound = 1.0 / (in_size ** 0.5)
    params = {}
    for i, (_, etype, _) in enumerate(canonical_etypes):
        wk, bk = jax.random.split(keys[8 + i])
        w = jax.random.uniform(wk, (in_size, out_size), jnp.float32, -bound, bound)
        b = jax.random.uniform(bk, (1, out_size), jnp.float32, -bound, bound)
        params[etype] = (w, b)

    out = hetero_rgcn_layer(canonical_etypes, graph_edges, num_nodes,
                            feat_dict, params)
    out = jax.tree_util.tree_map(jax.block_until_ready, out)

    ref = hetero_rgcn_layer_ref(canonical_etypes, graph_edges, num_nodes,
                                feat_dict, params)
    for ntype in ref:
        assert out[ntype].shape == ref[ntype].shape, ntype
        # bf16 MXU operands (f32 accumulation) => ~1e-2 relative tolerance.
        assert jnp.allclose(out[ntype], ref[ntype], atol=2e-2, rtol=2e-2), ntype

    print("KERNEL_OK")
</pallas_src>

<mosaic_0001>
module attributes {stable_mosaic.version = 11 : i64} {
  func.func @_linear_kernel(%arg0: i32, %arg1: memref<128x128xbf16, #tpu.memory_space<vmem>>, %arg2: memref<128x128xbf16, #tpu.memory_space<vmem>>, %arg3: memref<128x128xbf16, #tpu.memory_space<vmem>>) attributes {dimension_semantics = [#tpu.dimension_semantics<parallel>], iteration_bounds = array<i64: 1>, scalar_prefetch = 0 : i64, scratch_operands = 0 : i64, tpu.core_type = #tpu.core_type<tc>, window_params = [{transform_indices = @transform_0, window_bounds = array<i64: 128, 128>}, {pipeline_mode = #tpu.pipeline_mode<synchronous>, transform_indices = @transform_1, window_bounds = array<i64: 128, 128>}, {transform_indices = @transform_2, window_bounds = array<i64: 128, 128>}]} {
    %c0 = arith.constant 0 : index
    %c0_0 = arith.constant 0 : index
    %0 = vector.load %arg1[%c0, %c0_0] : memref<128x128xbf16, #tpu.memory_space<vmem>>, vector<128x128xbf16>
    %c0_1 = arith.constant 0 : index
    %c0_2 = arith.constant 0 : index
    %1 = vector.load %arg2[%c0_1, %c0_2] : memref<128x128xbf16, #tpu.memory_space<vmem>>, vector<128x128xbf16>
    %cst = arith.constant dense<0.000000e+00> : vector<128x128xf32>
    %2 = tpu.matmul %0, %1, %cst {dimension_numbers = #tpu.dot_dimension_numbers<[1], [0], [0], [1], [0, 0, 1, 1], [], []>} : vector<128x128xbf16>, vector<128x128xbf16>, vector<128x128xf32> -> vector<128x128xf32>
    %3 = arith.truncf %2 : vector<128x128xf32> to vector<128x128xbf16>
    %c0_3 = arith.constant 0 : index
    %c0_4 = arith.constant 0 : index
    %4 = vector.load %arg3[%c0_3, %c0_4] : memref<128x128xbf16, #tpu.memory_space<vmem>>, vector<128x128xbf16>
    tpu.vector_store %arg3[%c0_3, %c0_4], %3 {strides = array<i32>} : memref<128x128xbf16, #tpu.memory_space<vmem>>, vector<128x128xbf16>,
    return
  }
  func.func @transform_0(%arg0: i32) -> (i32, i32) {
    %c0_i32 = arith.constant 0 : i32
    %c0_i32_0 = arith.constant 0 : i32
    return %arg0, %c0_i32 : i32, i32
  }
  func.func @transform_1(%arg0: i32) -> (i32, i32) {
    %c0_i32 = arith.constant 0 : i32
    %c0_i32_0 = arith.constant 0 : i32
    %c0_i32_1 = arith.constant 0 : i32
    return %c0_i32, %c0_i32_0 : i32, i32
  }
  func.func @transform_2(%arg0: i32) -> (i32, i32) {
    %c0_i32 = arith.constant 0 : i32
    %c0_i32_0 = arith.constant 0 : i32
    return %arg0, %c0_i32 : i32, i32
  }
}

</mosaic_0001>

<llo_original>
// kernel: linear_bf16.1
$region0: #{linear_bf16.1}
  #allocation0 [shape = 'u32[]', space=smem, size = 0x4, offset = 0x4, fixed_abs, tag = 'smem constant byte address 0x4 - core index']
  #allocation1 [shape = 'u32[72,128]{1,0:T(1,128)}', space=vmem, size = 0x9000, scoped, tag = 'internal scratch']
  %s0 = inlined_call_operand.hbm [shape: bf16[128,128], index: 0, kind: input, shape index: {}]
  %s1 = inlined_call_operand.hbm [shape: bf16[128,128], index: 1, kind: input, shape index: {}]
  %s2 = inlined_call_operand.hbm [shape: bf16[128,128], index: 2, kind: output, shape index: {}]
  %s3 = sld [smem:[#allocation0]]
  $region26: #{linear_bf16.1} parent=0
    _
  %s5 = ssub.s32 1, %s3
  %s6 = scalar_select 0, %s5, %s3
  $region1: #{linear_bf16.1} parent=0
    #allocation2 [shape = 'u8[32768]{0}', space=vmem, size = 0x8000, scoped, tag = 'input window, operand 0, single buffered']
    #allocation3 [shape = 's32[1]{0}', space=sflag, size = 0x4, scoped, tag = 'scoped memory for linear_bf16.1']
    #allocation4 [shape = 's32[1]{0}', space=sflag, size = 0x4, scoped, tag = 'scoped memory for linear_bf16.1']
    #allocation5 [shape = 'u8[32768]{0}', space=vmem, size = 0x8000, scoped, tag = 'input window, operand 1, single buffered']
    #allocation6 [shape = 's32[1]{0}', space=sflag, size = 0x4, scoped, tag = 'scoped memory for linear_bf16.1']
    #allocation7 [shape = 'u8[32768]{0}', space=vmem, size = 0x8000, scoped, tag = 'output window, operand 0, single buffered']
    %7 = vsyncpa [#allocation3], 0
    %8 = vsyncpa [#allocation6], 0
    %9 = vsyncpa [#allocation4], 0
    // Predicated region
    $region2: #{linear_bf16.1} parent=1 // pred_check
      _
    $region3: #{linear_bf16.1} parent=1 // pred_check_branch
      %11 = sbr.rel (0) target = $region5
    $region4: #{linear_bf16.1} parent=1 // pred_region
      %13 = vsyncadd [#allocation3], 0
      %s14 = sshll.u32 %s0, 4
      %s15 = int_to_ptr.hbm [resolvable:$true] %s14
      %s16 = sshll.u32 [#allocation2], 4
      %s17 = int_to_ptr.vmem [resolvable:$true] %s16
      %22 = dma.hbm_to_vmem [thread:$0]  %s15, 1024, %s17, [#allocation3], 64, 64, 4
    $region5: #{linear_bf16.1} parent=1 // pred_fallthru
      _
    // Predicated region
    $region6: #{linear_bf16.1} parent=1 // pred_check
      _
    $region7: #{linear_bf16.1} parent=1 // pred_check_branch
      %24 = sbr.rel (0) target = $region9
    $region8: #{linear_bf16.1} parent=1 // pred_region
      %26 = vsyncadd [#allocation6], 0
      %s27 = sshll.u32 %s1, 4
      %s28 = int_to_ptr.hbm [resolvable:$true] %s27
      %s29 = sshll.u32 [#allocation5], 4
      %s30 = int_to_ptr.vmem [resolvable:$true] %s29
      %35 = dma.hbm_to_vmem [thread:$0]  %s28, 1024, %s30, [#allocation6], 64, 64, 4
    $region9: #{linear_bf16.1} parent=1 // pred_fallthru
      _
    // Predicated region
    $region10: #{linear_bf16.1} parent=1 // pred_check
      _
    $region11: #{linear_bf16.1} parent=1 // pred_check_branch
      %37 = sbr.rel (0) target = $region13
    $region12: #{linear_bf16.1} parent=1 // pred_region
      %39 = dma.done [#allocation3], 1024
    $region13: #{linear_bf16.1} parent=1 // pred_fallthru
      _
    // Predicated region
    $region14: #{linear_bf16.1} parent=1 // pred_check
      _
    $region15: #{linear_bf16.1} parent=1 // pred_check_branch
      %41 = sbr.rel (0) target = $region17
    $region16: #{linear_bf16.1} parent=1 // pred_region
      %43 = dma.done [#allocation6], 1024
    $region17: #{linear_bf16.1} parent=1 // pred_fallthru
      _
    %v44 = vld [vmem:[#allocation2] sm:$0xf]
    %v45 = vld [vmem:[#allocation2 + $0x4] sm:$0xf]
    %v46 = vld [vmem:[#allocation2 + $0x8] sm:$0xf]
    %v47 = vld [vmem:[#allocation2 + $0xc] sm:$0xf]
    %v48 = vld [vmem:[#allocation2 + $0x10] sm:$0xf]
    %v49 = vld [vmem:[#allocation2 + $0x14] sm:$0xf]
    %v50 = vld [vmem:[#allocation2 + $0x18] sm:$0xf]
    %v51 = vld [vmem:[#allocation2 + $0x1c] sm:$0xf]
    %v52 = vld [vmem:[#allocation2 + $0x20] sm:$0xf]
    %v53 = vld [vmem:[#allocation2 + $0x24] sm:$0xf]
    %v54 = vld [vmem:[#allocation2 + $0x28] sm:$0xf]
    %v55 = vld [vmem:[#allocation2 + $0x2c] sm:$0xf]
    %v56 = vld [vmem:[#allocation2 + $0x30] sm:$0xf]
    %v57 = vld [vmem:[#allocation2 + $0x34] sm:$0xf]
    %v58 = vld [vmem:[#allocation2 + $0x38] sm:$0xf]
    %v59 = vld [vmem:[#allocation2 + $0x3c] sm:$0xf]
    %v60 = vld [vmem:[#allocation5] sm:$0xf]
    %v61 = vld [vmem:[#allocation5 + $0x4] sm:$0xf]
    %v62 = vld [vmem:[#allocation5 + $0x8] sm:$0xf]
    %v63 = vld [vmem:[#allocation5 + $0xc] sm:$0xf]
    %v64 = vld [vmem:[#allocation5 + $0x10] sm:$0xf]
    %v65 = vld [vmem:[#allocation5 + $0x14] sm:$0xf]
    %v66 = vld [vmem:[#allocation5 + $0x18] sm:$0xf]
    %v67 = vld [vmem:[#allocation5 + $0x1c] sm:$0xf]
    %v68 = vld [vmem:[#allocation5 + $0x20] sm:$0xf]
    %v69 = vld [vmem:[#allocation5 + $0x24] sm:$0xf]
    %v70 = vld [vmem:[#allocation5 + $0x28] sm:$0xf]
    %v71 = vld [vmem:[#allocation5 + $0x2c] sm:$0xf]
    %v72 = vld [vmem:[#allocation5 + $0x30] sm:$0xf]
    %v73 = vld [vmem:[#allocation5 + $0x34] sm:$0xf]
    %v74 = vld [vmem:[#allocation5 + $0x38] sm:$0xf]
    %v75 = vld [vmem:[#allocation5 + $0x3c] sm:$0xf]
    %v92 = vunpack.c.l.b16 %v44
    %v93 = vunpack.c.l.b16 %v45
    %v94 = vunpack.c.l.b16 %v46
    %v95 = vunpack.c.l.b16 %v47
    %v96 = vunpack.c.l.b16 %v48
    %v97 = vunpack.c.l.b16 %v49
    %v98 = vunpack.c.l.b16 %v50
    %v99 = vunpack.c.l.b16 %v51
    %v100 = vunpack.c.l.b16 %v52
    %v101 = vunpack.c.l.b16 %v53
    %v102 = vunpack.c.l.b16 %v54
    %v103 = vunpack.c.l.b16 %v55
    %v104 = vunpack.c.l.b16 %v56
    %v105 = vunpack.c.l.b16 %v57
    %v106 = vunpack.c.l.b16 %v58
    %v107 = vunpack.c.l.b16 %v59
    %v108 = vpack.c.b16 %v93, %v92
    %v109 = vpack.c.b16 %v95, %v94
    %v110 = vpack.c.b16 %v97, %v96
    %v111 = vpack.c.b16 %v99, %v98
    %v112 = vpack.c.b16 %v101, %v100
    %v113 = vpack.c.b16 %v103, %v102
    %v114 = vpack.c.b16 %v105, %v104
    %v115 = vpack.c.b16 %v107, %v106
    %v140 = vunpack.c.l.b16 %v60
    %v141 = vunpack.c.l.b16 %v61
    %v142 = vunpack.c.l.b16 %v62
    %v143 = vunpack.c.l.b16 %v63
    %v144 = vunpack.c.l.b16 %v64
    %v145 = vunpack.c.l.b16 %v65
    %v146 = vunpack.c.l.b16 %v66
    %v147 = vunpack.c.l.b16 %v67
    %v148 = vunpack.c.l.b16 %v68
    %v149 = vunpack.c.l.b16 %v69
    %v150 = vunpack.c.l.b16 %v70
    %v151 = vunpack.c.l.b16 %v71
    %v152 = vunpack.c.l.b16 %v72
    %v153 = vunpack.c.l.b16 %v73
    %v154 = vunpack.c.l.b16 %v74
    %v155 = vunpack.c.l.b16 %v75
    %v156 = vpack.c.b16 %v141, %v140
    %v157 = vpack.c.b16 %v143, %v142
    %v158 = vpack.c.b16 %v145, %v144
    %v159 = vpack.c.b16 %v147, %v146
    %v160 = vpack.c.b16 %v149, %v148
    %v161 = vpack.c.b16 %v151, %v150
    %v162 = vpack.c.b16 %v153, %v152
    %v163 = vpack.c.b16 %v155, %v154
    %172 = vmatpush.bf16.msra.mxu0 %v163
    %173 = vmatpush.bf16.msra.mxu0 %v162
    %174 = vmatpush.bf16.msra.mxu0 %v161
    %175 = vmatpush.bf16.msra.mxu0 %v160
    %176 = vmatpush.bf16.msra.mxu0 %v159
    %177 = vmatpush.bf16.msra.mxu0 %v158
    %178 = vmatpush.bf16.msra.mxu0 %v157
    %179 = vmatpush.bf16.msra.mxu0 %v156
    %180 = vmatmul.bf16.gmra.mxu0 %v108
    %v181 = vpop.f32.mrf.mxu0
    %v182 = vadd.f32 0.0, %v181
    %v183 = vpop.f32.mrf.mxu0
    %v184 = vadd.f32 0.0, %v183
    %185 = vmatmul.bf16.gmra.mxu0 %v109
    %v186 = vpop.f32.mrf.mxu0
    %v187 = vadd.f32 0.0, %v186
    %v188 = vpop.f32.mrf.mxu0
    %v189 = vadd.f32 0.0, %v188
    %190 = vmatmul.bf16.gmra.mxu0 %v110
    %v191 = vpop.f32.mrf.mxu0
    %v192 = vadd.f32 0.0, %v191
    %v193 = vpop.f32.mrf.mxu0
    %v194 = vadd.f32 0.0, %v193
    %195 = vmatmul.bf16.gmra.mxu0 %v111
    %v196 = vpop.f32.mrf.mxu0
    %v197 = vadd.f32 0.0, %v196
    %v198 = vpop.f32.mrf.mxu0
    %v199 = vadd.f32 0.0, %v198
    %200 = vmatmul.bf16.gmra.mxu0 %v112
    %v201 = vpop.f32.mrf.mxu0
    %v202 = vadd.f32 0.0, %v201
    %v203 = vpop.f32.mrf.mxu0
    %v204 = vadd.f32 0.0, %v203
    %205 = vmatmul.bf16.gmra.mxu0 %v113
    %v206 = vpop.f32.mrf.mxu0
    %v207 = vadd.f32 0.0, %v206
    %v208 = vpop.f32.mrf.mxu0
    %v209 = vadd.f32 0.0, %v208
    %210 = vmatmul.bf16.gmra.mxu0 %v114
    %v211 = vpop.f32.mrf.mxu0
    %v212 = vadd.f32 0.0, %v211
    %v213 = vpop.f32.mrf.mxu0
    %v214 = vadd.f32 0.0, %v213
    %215 = vmatmul.bf16.gmra.mxu0 %v115
    %v216 = vpop.f32.mrf.mxu0
    %v217 = vadd.f32 0.0, %v216
    %v218 = vpop.f32.mrf.mxu0
    %v219 = vadd.f32 0.0, %v218
    %220 = vdwg.mxu0
    %v221 = vpack.c.bf16 %v182, %v182
    %v222 = vpack.c.bf16 %v184, %v184
    %v223 = vpack.c.bf16 %v187, %v187
    %v224 = vpack.c.bf16 %v189, %v189
    %v225 = vpack.c.bf16 %v192, %v192
    %v226 = vpack.c.bf16 %v194, %v194
    %v227 = vpack.c.bf16 %v197, %v197
    %v228 = vpack.c.bf16 %v199, %v199
    %v229 = vpack.c.bf16 %v202, %v202
    %v230 = vpack.c.bf16 %v204, %v204
    %v231 = vpack.c.bf16 %v207, %v207
    %v232 = vpack.c.bf16 %v209, %v209
    %v233 = vpack.c.bf16 %v212, %v212
    %v234 = vpack.c.bf16 %v214, %v214
    %v235 = vpack.c.bf16 %v217, %v217
    %v236 = vpack.c.bf16 %v219, %v219
    %237 = vst [vmem:[#allocation7] sm:$0xf] %v221
    %238 = vst [vmem:[#allocation7 + $0x4] sm:$0xf] %v222
    %239 = vst [vmem:[#allocation7 + $0x8] sm:$0xf] %v223
    %240 = vst [vmem:[#allocation7 + $0xc] sm:$0xf] %v224
    %241 = vst [vmem:[#allocation7 + $0x10] sm:$0xf] %v225
    %242 = vst [vmem:[#allocation7 + $0x14] sm:$0xf] %v226
    %243 = vst [vmem:[#allocation7 + $0x18] sm:$0xf] %v227
    %244 = vst [vmem:[#allocation7 + $0x1c] sm:$0xf] %v228
    %245 = vst [vmem:[#allocation7 + $0x20] sm:$0xf] %v229
    %246 = vst [vmem:[#allocation7 + $0x24] sm:$0xf] %v230
    %247 = vst [vmem:[#allocation7 + $0x28] sm:$0xf] %v231
    %248 = vst [vmem:[#allocation7 + $0x2c] sm:$0xf] %v232
    %249 = vst [vmem:[#allocation7 + $0x30] sm:$0xf] %v233
    %250 = vst [vmem:[#allocation7 + $0x34] sm:$0xf] %v234
    %251 = vst [vmem:[#allocation7 + $0x38] sm:$0xf] %v235
    %252 = vst [vmem:[#allocation7 + $0x3c] sm:$0xf] %v236
    // Predicated region
    $region18: #{linear_bf16.1} parent=1 // pred_check
      _
    $region19: #{linear_bf16.1} parent=1 // pred_check_branch
      %254 = sbr.rel (0) target = $region21
    $region20: #{linear_bf16.1} parent=1 // pred_region
      %256 = vsyncadd [#allocation4], 0
      %s257 = sshll.u32 [#allocation7], 4
      %s258 = int_to_ptr.vmem [resolvable:$true] %s257
      %s259 = sshll.u32 %s2, 4
      %s260 = int_to_ptr.hbm [resolvable:$true] %s259
      %265 = dma.vmem_to_hbm [thread:$0]  %s258, 1024, %s260, [#allocation4], 64, 64, 4
    $region21: #{linear_bf16.1} parent=1 // pred_fallthru
      _
    // Predicated region
    $region22: #{linear_bf16.1} parent=1 // pred_check
      _
    $region23: #{linear_bf16.1} parent=1 // pred_check_branch
      %267 = sbr.rel (0) target = $region25
    $region24: #{linear_bf16.1} parent=1 // pred_region
      %269 = dma.done [#allocation4], 1024
    $region25: #{linear_bf16.1} parent=1 // pred_fallthru
      _
    %270 = vsyncpa [#allocation3], 1
    %271 = vsyncpa [#allocation6], 1
    %272 = vsyncpa [#allocation4], 1

</llo_original>
